<compile_context>
chip_gen: v6e
topology: v6e:2x2x1
jax: 0.10.0
libtpu: 0.0.40
codegen_flags: <defaults>
</compile_context>

<pallas_src>
import functools

import jax
import jax.numpy as jnp
from jax.experimental import pallas as pl
from jax.experimental.pallas import tpu as pltpu


def _value_kernel(x_ref, w1_ref, b1_ref, w2_ref, b2_ref, w3_ref, b3_ref, o_ref,
                  *, act_dtype):
    # x_ref:  (state_dim, tile_b) f32  -> cast to bf16 for the MXU in-kernel
    # w1_ref: (h1, state_dim) bf16      b1_ref: (h1, 1) act_dtype
    # w2_ref: (h2, h1)       bf16       b2_ref: (h2, 1) act_dtype
    # w3_ref: (1, h2)        bf16       b3_ref: (1,) f32 scalar in SMEM
    # o_ref:  (1, tile_b)    f32        lane-dense output
    x = x_ref[...].astype(jnp.bfloat16)

    # Hidden layer 1: bf16 MXU matmul, f32 accumulation, activation in act_dtype.
    h = jnp.dot(w1_ref[...], x, preferred_element_type=jnp.float32)
    h = jnp.tanh(h.astype(act_dtype) + b1_ref[...])

    # Hidden layer 2.
    h = jnp.dot(w2_ref[...], h.astype(jnp.bfloat16),
                preferred_element_type=jnp.float32)
    h = jnp.tanh(h.astype(act_dtype) + b2_ref[...])

    # Value head: (1, h2) @ (h2, tile_b) -> (1, tile_b) f32; negligible MXU work,
    # result is lane-dense and no XLU lane-reduce is needed.
    v = jnp.dot(w3_ref[...], h.astype(jnp.bfloat16),
                preferred_element_type=jnp.float32) + b3_ref[0]

    # sigmoid(v) = 0.5 * (tanh(v / 2) + 1): one EUP transcendental.
    o_ref[...] = 0.5 * (jnp.tanh(0.5 * v) + 1.0)


def _round_up(n, m):
    return ((n + m - 1) // m) * m


def _pick_act_dtype():
    # v5e has no bf16 VPU/EUP: keep element-wise math in f32 there; bf16 elsewhere.
    try:
        kind = jax.devices()[0].device_kind.lower()
    except Exception:
        return jnp.bfloat16
    return jnp.float32 if "v5" in kind else jnp.bfloat16


def value_forward(x, w1, b1, w2, b2, w3, b3, *, tile_b=4096, act_dtype=None):
    """x: (B, state_dim) f32; w_i stored (in_features, out_features); w3: (hidden, 1)."""
    B, state_dim = x.shape
    h1 = w1.shape[1]
    h2 = w2.shape[1]
    if act_dtype is None:
        act_dtype = _pick_act_dtype()

    # Lane-aligned batch tile; cap at ceil(B/2) (rounded up to 128) so the grid has at
    # least 2 steps whenever the batch allows it -> both v7x TensorCores get work.
    tile_b = int(min(tile_b, max(128, _round_up(-(-B // 2), 128))))
    tile_b = _round_up(tile_b, 128)
    b_pad = _round_up(B, tile_b)

    # Batch-on-lanes layout: present x as (state_dim, B), padded along lanes.
    # TODO(synk): have the upstream producer emit x already transposed to skip this pass.
    x_t = jnp.transpose(x)
    if b_pad != B:
        x_t = jnp.pad(x_t, ((0, 0), (0, b_pad - B)))

    # One-time weight/bias prep (transposed bf16 MXU operands; biases as columns).
    w1_t = jnp.transpose(w1).astype(jnp.bfloat16)            # (h1, state_dim)
    w2_t = jnp.transpose(w2).astype(jnp.bfloat16)            # (h2, h1)
    w3_row = jnp.transpose(w3).astype(jnp.bfloat16)          # (1, h2)
    b1_c = jnp.reshape(b1, (h1, 1)).astype(act_dtype)
    b2_c = jnp.reshape(b2, (h2, 1)).astype(act_dtype)
    b3_s = jnp.reshape(b3, (1,)).astype(jnp.float32)         # scalar -> SMEM

    const = lambda i: (0, 0)   # weights/biases stay resident across all batch tiles
    grid = (b_pad // tile_b,)

    cost = pl.CostEstimate(
        flops=2 * b_pad * (state_dim * h1 + h1 * h2 + h2),
        transcendentals=b_pad * (h1 + h2 + 1),
        bytes_accessed=4 * b_pad * state_dim + 4 * b_pad
        + 2 * (state_dim * h1 + h1 * h2 + h2) + 4 * (h1 + h2 + 1),
    )

    out = pl.pallas_call(
        functools.partial(_value_kernel, act_dtype=act_dtype),
        out_shape=jax.ShapeDtypeStruct((1, b_pad), jnp.float32),
        grid_spec=pltpu.PrefetchScalarGridSpec(
            num_scalar_prefetch=0,
            grid=grid,
            in_specs=[
                pl.BlockSpec((state_dim, tile_b), lambda i: (0, i)),   # x^T tile
                pl.BlockSpec((h1, state_dim), const),                  # W1^T
                pl.BlockSpec((h1, 1), const),                          # b1
                pl.BlockSpec((h2, h1), const),                         # W2^T
                pl.BlockSpec((h2, 1), const),                          # b2
                pl.BlockSpec((1, h2), const),                          # W3 row
                pl.BlockSpec(memory_space=pltpu.MemorySpace.SMEM),     # b3 scalar
            ],
            out_specs=pl.BlockSpec((1, tile_b), lambda i: (0, i)),     # lane-dense
        ),
        compiler_params=pltpu.CompilerParams(
            dimension_semantics=("parallel",),   # shard batch tiles across TCs on v7x
        ),
        cost_estimate=cost,
    )(x_t, w1_t, b1_c, w2_t, b2_c, w3_row, b3_s)

    return jnp.transpose(out[:, :B])   # (B, 1)


def init_params(key, state_dim, hidden_size=(128, 128)):
    """Deterministic init mimicking nn.Linear defaults (uniform +/- 1/sqrt(fan_in)),
    with the value_head weight scaled by 0.1 and bias zeroed, as in the module."""
    params = []
    last_dim = state_dim
    keys = jax.random.split(key, 2 * (len(hidden_size) + 1))
    ki = 0
    for nh in hidden_size:
        bound = 1.0 / (last_dim ** 0.5)
        w = jax.random.uniform(keys[ki], (last_dim, nh), jnp.float32, -bound, bound)
        b = jax.random.uniform(keys[ki + 1], (1, nh), jnp.float32, -bound, bound)
        params.extend([w, b])
        ki += 2
        last_dim = nh
    bound = 1.0 / (last_dim ** 0.5)
    w_head = jax.random.uniform(keys[ki], (last_dim, 1), jnp.float32, -bound, bound) * 0.1
    b_head = jnp.zeros((1, 1), jnp.float32)
    params.extend([w_head, b_head])
    return params


def reference_forward(x, w1, b1, w2, b2, w3, b3):
    h = jnp.tanh(x @ w1 + b1)
    h = jnp.tanh(h @ w2 + b2)
    return jax.nn.sigmoid(h @ w3 + b3)


if __name__ == "__main__":
    key = jax.random.PRNGKey(0)
    k_x, k_p = jax.random.split(key)

    batch = 8
    state_dim = 32
    hidden = (128, 128)

    x = jax.random.normal(k_x, (batch, state_dim), dtype=jnp.float32)
    w1, b1, w2, b2, w3, b3 = init_params(k_p, state_dim, hidden)

    out = value_forward(x, w1, b1, w2, b2, w3, b3)
    out = jax.block_until_ready(out)

    ref = reference_forward(x, w1, b1, w2, b2, w3, b3)
    assert out.shape == (batch, 1), out.shape
    assert bool(jnp.all(jnp.isfinite(out)))
    # bf16 MXU inputs (+ bf16 activations on v6e/v7x) => loosened tolerance vs f32 ref.
    assert jnp.allclose(out, ref.reshape(batch, 1), atol=2e-2, rtol=2e-2)

    # Sensitivity check with an unscaled head (outputs away from sigmoid(0)=0.5),
    # so the comparison actually exercises the bf16 activation path.
    w3_big = w3 * 10.0
    b3_big = b3 + 0.3
    out2 = jax.block_until_ready(value_forward(x, w1, b1, w2, b2, w3_big, b3_big))
    ref2 = reference_forward(x, w1, b1, w2, b2, w3_big, b3_big)
    assert jnp.allclose(out2, ref2.reshape(batch, 1), atol=2e-2, rtol=2e-2)

    print("KERNEL_OK")
</pallas_src>

<mosaic_0001>
module attributes {stable_mosaic.version = 11 : i64} {
  func.func @_value_kernel(%arg0: i32, %arg1: memref<32x128xf32, #tpu.memory_space<vmem>>, %arg2: memref<128x32xbf16, #tpu.memory_space<vmem>>, %arg3: memref<128x1xbf16, #tpu.memory_space<vmem>>, %arg4: memref<128x128xbf16, #tpu.memory_space<vmem>>, %arg5: memref<128x1xbf16, #tpu.memory_space<vmem>>, %arg6: memref<1x128xbf16, #tpu.memory_space<vmem>>, %arg7: memref<1xf32, #tpu.memory_space<smem>>, %arg8: memref<1x128xf32, #tpu.memory_space<vmem>>) attributes {dimension_semantics = [#tpu.dimension_semantics<parallel>], iteration_bounds = array<i64: 1>, scalar_prefetch = 0 : i64, scratch_operands = 0 : i64, tpu.core_type = #tpu.core_type<tc>, window_params = [{transform_indices = @transform_0, window_bounds = array<i64: 32, 128>}, {pipeline_mode = #tpu.pipeline_mode<synchronous>, transform_indices = @transform_1, window_bounds = array<i64: 128, 32>}, {pipeline_mode = #tpu.pipeline_mode<synchronous>, transform_indices = @transform_2, window_bounds = array<i64: 128, 1>}, {pipeline_mode = #tpu.pipeline_mode<synchronous>, transform_indices = @transform_3, window_bounds = array<i64: 128, 128>}, {pipeline_mode = #tpu.pipeline_mode<synchronous>, transform_indices = @transform_4, window_bounds = array<i64: 128, 1>}, {pipeline_mode = #tpu.pipeline_mode<synchronous>, transform_indices = @transform_5, window_bounds = array<i64: 1, 128>}, {transform_indices = @transform_6, window_bounds = array<i64: 1>}, {transform_indices = @transform_7, window_bounds = array<i64: 1, 128>}]} {
    %c0 = arith.constant 0 : index
    %c0_0 = arith.constant 0 : index
    %0 = vector.load %arg1[%c0, %c0_0] : memref<32x128xf32, #tpu.memory_space<vmem>>, vector<32x128xf32>
    %1 = arith.truncf %0 : vector<32x128xf32> to vector<32x128xbf16>
    %c0_1 = arith.constant 0 : index
    %c0_2 = arith.constant 0 : index
    %2 = vector.load %arg2[%c0_1, %c0_2] : memref<128x32xbf16, #tpu.memory_space<vmem>>, vector<128x32xbf16>
    %cst = arith.constant dense<0.000000e+00> : vector<128x128xf32>
    %3 = tpu.matmul %2, %1, %cst {dimension_numbers = #tpu.dot_dimension_numbers<[1], [0], [0], [1], [0, 0, 1, 1], [], []>} : vector<128x32xbf16>, vector<32x128xbf16>, vector<128x128xf32> -> vector<128x128xf32>
    %4 = arith.truncf %3 : vector<128x128xf32> to vector<128x128xbf16>
    %c0_3 = arith.constant 0 : index
    %c0_4 = arith.constant 0 : index
    %5 = vector.load %arg3[%c0_3, %c0_4] : memref<128x1xbf16, #tpu.memory_space<vmem>>, vector<128x1xbf16>
    %6 = vector.broadcast %5 : vector<128x1xbf16> to vector<128x128xbf16>
    %7 = arith.addf %4, %6 : vector<128x128xbf16>
    %8 = math.tanh %7 : vector<128x128xbf16>
    %c0_5 = arith.constant 0 : index
    %c0_6 = arith.constant 0 : index
    %9 = vector.load %arg4[%c0_5, %c0_6] : memref<128x128xbf16, #tpu.memory_space<vmem>>, vector<128x128xbf16>
    %cst_7 = arith.constant dense<0.000000e+00> : vector<128x128xf32>
    %10 = tpu.matmul %9, %8, %cst_7 {dimension_numbers = #tpu.dot_dimension_numbers<[1], [0], [0], [1], [0, 0, 1, 1], [], []>} : vector<128x128xbf16>, vector<128x128xbf16>, vector<128x128xf32> -> vector<128x128xf32>
    %11 = arith.truncf %10 : vector<128x128xf32> to vector<128x128xbf16>
    %c0_8 = arith.constant 0 : index
    %c0_9 = arith.constant 0 : index
    %12 = vector.load %arg5[%c0_8, %c0_9] : memref<128x1xbf16, #tpu.memory_space<vmem>>, vector<128x1xbf16>
    %13 = vector.broadcast %12 : vector<128x1xbf16> to vector<128x128xbf16>
    %14 = arith.addf %11, %13 : vector<128x128xbf16>
    %15 = math.tanh %14 : vector<128x128xbf16>
    %c0_10 = arith.constant 0 : index
    %c0_11 = arith.constant 0 : index
    %16 = vector.load %arg6[%c0_10, %c0_11] : memref<1x128xbf16, #tpu.memory_space<vmem>>, vector<1x128xbf16>
    %cst_12 = arith.constant dense<0.000000e+00> : vector<1x128xf32>
    %17 = tpu.matmul %16, %15, %cst_12 {dimension_numbers = #tpu.dot_dimension_numbers<[1], [0], [0], [1], [0, 0, 1, 1], [], []>} : vector<1x128xbf16>, vector<128x128xbf16>, vector<1x128xf32> -> vector<1x128xf32>
    %c0_13 = arith.constant 0 : index
    %18 = memref.load %arg7[%c0_13] : memref<1xf32, #tpu.memory_space<smem>>
    %19 = vector.broadcast %18 : f32 to vector<1x128xf32>
    %20 = arith.addf %17, %19 : vector<1x128xf32>
    %cst_14 = arith.constant 5.000000e-01 : f32
    %21 = vector.broadcast %cst_14 : f32 to vector<1x128xf32>
    %22 = arith.mulf %21, %20 : vector<1x128xf32>
    %23 = math.tanh %22 : vector<1x128xf32>
    %cst_15 = arith.constant 1.000000e+00 : f32
    %24 = vector.broadcast %cst_15 : f32 to vector<1x128xf32>
    %25 = arith.addf %23, %24 : vector<1x128xf32>
    %cst_16 = arith.constant 5.000000e-01 : f32
    %26 = vector.broadcast %cst_16 : f32 to vector<1x128xf32>
    %27 = arith.mulf %26, %25 : vector<1x128xf32>
    %c0_17 = arith.constant 0 : index
    %c0_18 = arith.constant 0 : index
    %28 = vector.load %arg8[%c0_17, %c0_18] : memref<1x128xf32, #tpu.memory_space<vmem>>, vector<1x128xf32>
    tpu.vector_store %arg8[%c0_17, %c0_18], %27 {strides = array<i32>} : memref<1x128xf32, #tpu.memory_space<vmem>>, vector<1x128xf32>,
    return
  }
  func.func @transform_0(%arg0: i32) -> (i32, i32) {
    %c0_i32 = arith.constant 0 : i32
    %c0_i32_0 = arith.constant 0 : i32
    return %c0_i32, %arg0 : i32, i32
  }
  func.func @transform_1(%arg0: i32) -> (i32, i32) {
    %c0_i32 = arith.constant 0 : i32
    %c0_i32_0 = arith.constant 0 : i32
    %c0_i32_1 = arith.constant 0 : i32
    return %c0_i32, %c0_i32_0 : i32, i32
  }
  func.func @transform_2(%arg0: i32) -> (i32, i32) {
    %c0_i32 = arith.constant 0 : i32
    %c0_i32_0 = arith.constant 0 : i32
    %c0_i32_1 = arith.constant 0 : i32
    return %c0_i32, %c0_i32_0 : i32, i32
  }
  func.func @transform_3(%arg0: i32) -> (i32, i32) {
    %c0_i32 = arith.constant 0 : i32
    %c0_i32_0 = arith.constant 0 : i32
    %c0_i32_1 = arith.constant 0 : i32
    return %c0_i32, %c0_i32_0 : i32, i32
  }
  func.func @transform_4(%arg0: i32) -> (i32, i32) {
    %c0_i32 = arith.constant 0 : i32
    %c0_i32_0 = arith.constant 0 : i32
    %c0_i32_1 = arith.constant 0 : i32
    return %c0_i32, %c0_i32_0 : i32, i32
  }
  func.func @transform_5(%arg0: i32) -> (i32, i32) {
    %c0_i32 = arith.constant 0 : i32
    %c0_i32_0 = arith.constant 0 : i32
    %c0_i32_1 = arith.constant 0 : i32
    return %c0_i32, %c0_i32_0 : i32, i32
  }
  func.func @transform_6(%arg0: i32) -> i32 {
    %c0_i32 = arith.constant 0 : i32
    %c0_i32_0 = arith.constant 0 : i32
    return %c0_i32 : i32
  }
  func.func @transform_7(%arg0: i32) -> (i32, i32) {
    %c0_i32 = arith.constant 0 : i32
    %c0_i32_0 = arith.constant 0 : i32
    return %c0_i32, %arg0 : i32, i32
  }
}

</mosaic_0001>

<llo_original>
// kernel: tpu_custom_call.1
$region0: #{tpu_custom_call.1}
  #allocation0 [shape = 'u32[]', space=smem, size = 0x4, offset = 0x4, fixed_abs, tag = 'smem constant byte address 0x4 - core index']
  #allocation1 [shape = 'u32[144,128]{1,0:T(1,128)}', space=vmem, size = 0x12000, scoped, tag = 'internal scratch']
  #allocation2 [shape = 'f32[1]{0:T(128)S(6)}', space=smem, size = 0x200, scoped, tag = 'scoped memory for tpu_custom_call.1']
  %s0 = inlined_call_operand.vmem [shape: f32[32,128], index: 0, kind: input, shape index: {}]
  %s1 = inlined_call_operand.vmem [shape: bf16[128,32], index: 1, kind: input, shape index: {}]
  %s2 = inlined_call_operand.vmem [shape: bf16[128,1], index: 2, kind: input, shape index: {}]
  %s3 = inlined_call_operand.vmem [shape: bf16[128,128], index: 3, kind: input, shape index: {}]
  %s4 = inlined_call_operand.vmem [shape: bf16[128,1], index: 4, kind: input, shape index: {}]
  %s5 = inlined_call_operand.vmem [shape: bf16[1,128], index: 5, kind: input, shape index: {}]
  %s6 = inlined_call_operand.<no memory space> [shape: f32[1], index: 6, kind: input, shape index: {}]
  %s7 = inlined_call_operand.hbm [shape: f32[1,128], index: 7, kind: output, shape index: {}]
  %s8 = sld [smem:[#allocation0]]
  $region38: #{tpu_custom_call.1} parent=0
    _
  %s10 = ssub.s32 1, %s8
  %s11 = scalar_select 0, %s10, %s8
  %12 = sst [smem:[#allocation2]] %s6
  $region1: #{tpu_custom_call.1} parent=0
    #allocation3 [shape = 'u8[512]{0}', space=vmem, size = 0x400, scoped, tag = 'output window, operand 0, single buffered']
    #allocation4 [shape = 's32[1]{0}', space=sflag, size = 0x4, scoped, tag = 'scoped memory for tpu_custom_call.1']
    %13 = vsyncpa [#allocation4], 0
    // Predicated region
    $region2: #{tpu_custom_call.1} parent=1 // pred_check
      _
    $region3: #{tpu_custom_call.1} parent=1 // pred_check_branch
      %15 = sbr.rel (0) target = $region5
    $region4: #{tpu_custom_call.1} parent=1 // pred_region
      _
    $region5: #{tpu_custom_call.1} parent=1 // pred_fallthru
      _
    // Predicated region
    $region6: #{tpu_custom_call.1} parent=1 // pred_check
      _
    $region7: #{tpu_custom_call.1} parent=1 // pred_check_branch
      %17 = sbr.rel (0) target = $region9
    $region8: #{tpu_custom_call.1} parent=1 // pred_region
      _
    $region9: #{tpu_custom_call.1} parent=1 // pred_fallthru
      _
    // Predicated region
    $region10: #{tpu_custom_call.1} parent=1 // pred_check
      _
    $region11: #{tpu_custom_call.1} parent=1 // pred_check_branch
      %19 = sbr.rel (0) target = $region13
    $region12: #{tpu_custom_call.1} parent=1 // pred_region
      _
    $region13: #{tpu_custom_call.1} parent=1 // pred_fallthru
      _
    // Predicated region
    $region14: #{tpu_custom_call.1} parent=1 // pred_check
      _
    $region15: #{tpu_custom_call.1} parent=1 // pred_check_branch
      %21 = sbr.rel (0) target = $region17
    $region16: #{tpu_custom_call.1} parent=1 // pred_region
      _
    $region17: #{tpu_custom_call.1} parent=1 // pred_fallthru
      _
    // Predicated region
    $region18: #{tpu_custom_call.1} parent=1 // pred_check
      _
    $region19: #{tpu_custom_call.1} parent=1 // pred_check_branch
      %23 = sbr.rel (0) target = $region21
    $region20: #{tpu_custom_call.1} parent=1 // pred_region
      _
    $region21: #{tpu_custom_call.1} parent=1 // pred_fallthru
      _
    // Predicated region
    $region22: #{tpu_custom_call.1} parent=1 // pred_check
      _
    $region23: #{tpu_custom_call.1} parent=1 // pred_check_branch
      %25 = sbr.rel (0) target = $region25
    $region24: #{tpu_custom_call.1} parent=1 // pred_region
      _
    $region25: #{tpu_custom_call.1} parent=1 // pred_fallthru
      _
    // Predicated region
    $region26: #{tpu_custom_call.1} parent=1 // pred_check
      _
    $region27: #{tpu_custom_call.1} parent=1 // pred_check_branch
      %27 = sbr.rel (0) target = $region29
    $region28: #{tpu_custom_call.1} parent=1 // pred_region
      _
    $region29: #{tpu_custom_call.1} parent=1 // pred_fallthru
      _
    %v29 = vld [vmem:[%s0] sm:$0xff]
    %v30 = vld [vmem:[%s0 + $0x8] sm:$0xff]
    %v31 = vld [vmem:[%s0 + $0x10] sm:$0xff]
    %v32 = vld [vmem:[%s0 + $0x18] sm:$0xff]
    %v33 = vpack.c.bf16 %v30, %v29
    %v34 = vpack.c.bf16 %v32, %v31
    %v35 = vld [vmem:[%s1] sm:$0xf]
    %v36 = vld [vmem:[%s1 + $0x4] sm:$0xf]
    %v37 = vld [vmem:[%s1 + $0x8] sm:$0xf]
    %v38 = vld [vmem:[%s1 + $0xc] sm:$0xf]
    %v39 = vld [vmem:[%s1 + $0x10] sm:$0xf]
    %v40 = vld [vmem:[%s1 + $0x14] sm:$0xf]
    %v41 = vld [vmem:[%s1 + $0x18] sm:$0xf]
    %v42 = vld [vmem:[%s1 + $0x1c] sm:$0xf]
    %v43 = vld [vmem:[%s1 + $0x20] sm:$0xf]
    %v44 = vld [vmem:[%s1 + $0x24] sm:$0xf]
    %v45 = vld [vmem:[%s1 + $0x28] sm:$0xf]
    %v46 = vld [vmem:[%s1 + $0x2c] sm:$0xf]
    %v47 = vld [vmem:[%s1 + $0x30] sm:$0xf]
    %v48 = vld [vmem:[%s1 + $0x34] sm:$0xf]
    %v49 = vld [vmem:[%s1 + $0x38] sm:$0xf]
    %v50 = vld [vmem:[%s1 + $0x3c] sm:$0xf]
    %v67 = vunpack.c.l.b16 %v35
    %v68 = vunpack.c.l.b16 %v36
    %v69 = vunpack.c.l.b16 %v37
    %v70 = vunpack.c.l.b16 %v38
    %v71 = vunpack.c.l.b16 %v39
    %v72 = vunpack.c.l.b16 %v40
    %v73 = vunpack.c.l.b16 %v41
    %v74 = vunpack.c.l.b16 %v42
    %v75 = vunpack.c.l.b16 %v43
    %v76 = vunpack.c.l.b16 %v44
    %v77 = vunpack.c.l.b16 %v45
    %v78 = vunpack.c.l.b16 %v46
    %v79 = vunpack.c.l.b16 %v47
    %v80 = vunpack.c.l.b16 %v48
    %v81 = vunpack.c.l.b16 %v49
    %v82 = vunpack.c.l.b16 %v50
    %v83 = vpack.c.b16 %v68, %v67
    %v84 = vpack.c.b16 %v70, %v69
    %v85 = vpack.c.b16 %v72, %v71
    %v86 = vpack.c.b16 %v74, %v73
    %v87 = vpack.c.b16 %v76, %v75
    %v88 = vpack.c.b16 %v78, %v77
    %v89 = vpack.c.b16 %v80, %v79
    %v90 = vpack.c.b16 %v82, %v81
    %vm91 = vcmask 261120
    %v93 = vsel %vm91, %v83, 0
    %v96 = vsel %vm91, %v84, 0
    %v99 = vsel %vm91, %v85, 0
    %v102 = vsel %vm91, %v86, 0
    %v105 = vsel %vm91, %v87, 0
    %v108 = vsel %vm91, %v88, 0
    %v111 = vsel %vm91, %v89, 0
    %v114 = vsel %vm91, %v90, 0
    %116 = vmatprep.subr.bf16.mxu0 0
    %117 = vmatpush1.bf16.msra.mxu0 0
    %118 = vmatprep.subr.bf16.mxu0 0
    %119 = vmatpush1.bf16.msra.mxu0 0
    %120 = vmatprep.subr.bf16.mxu0 0
    %121 = vmatpush1.bf16.msra.mxu0 0
    %122 = vmatprep.subr.bf16.mxu0 0
    %123 = vmatpush1.bf16.msra.mxu0 0
    %124 = vmatprep.subr.bf16.mxu0 0
    %125 = vmatpush1.bf16.msra.mxu0 0
    %126 = vmatprep.subr.bf16.mxu0 0
    %127 = vmatpush1.bf16.msra.mxu0 0
    %128 = vmatprep.subr.bf16.mxu0 0
    %129 = vmatpush1.bf16.msra.mxu0 %v34
    %130 = vmatprep.subr.bf16.mxu0 0
    %131 = vmatpush1.bf16.msra.mxu0 %v33
    %132 = vmatprep.subr.bf16.mxu0 0
    %133 = vmatpush2.bf16.msra.mxu0 0
    %134 = vmatprep.subr.bf16.mxu0 0
    %135 = vmatpush2.bf16.msra.mxu0 0
    %136 = vmatprep.subr.bf16.mxu0 0
    %137 = vmatpush2.bf16.msra.mxu0 0
    %138 = vmatprep.subr.bf16.mxu0 0
    %139 = vmatpush2.bf16.msra.mxu0 0
    %140 = vmatprep.subr.bf16.mxu0 0
    %141 = vmatpush2.bf16.msra.mxu0 0
    %142 = vmatprep.subr.bf16.mxu0 0
    %143 = vmatpush2.bf16.msra.mxu0 0
    %144 = vmatprep.subr.bf16.mxu0 0
    %145 = vmatpush2.bf16.msra.mxu0 0
    %146 = vmatprep.subr.bf16.mxu0 0
    %147 = vmatpush2.bf16.msra.mxu0 0
    %148 = vmatprep.mubr.bf16.mxu0 0
    %149 = vmatmul.mubr.bf16.gmra.mxu0 %v93
    %v150 = vpop.f32.mrf.mxu0
    %v151 = vadd.f32 0.0, %v150
    %v152 = vpop.f32.mrf.mxu0
    %v153 = vpop.f32.mrf.mxu0
    %v154 = vadd.f32 0.0, %v153
    %v155 = vpop.f32.mrf.mxu0
    %156 = vmatprep.mubr.bf16.mxu0 0
    %157 = vmatmul.mubr.bf16.gmra.mxu0 %v96
    %v158 = vpop.f32.mrf.mxu0
    %v159 = vadd.f32 0.0, %v158
    %v160 = vpop.f32.mrf.mxu0
    %v161 = vpop.f32.mrf.mxu0
    %v162 = vadd.f32 0.0, %v161
    %v163 = vpop.f32.mrf.mxu0
    %164 = vmatprep.mubr.bf16.mxu0 0
    %165 = vmatmul.mubr.bf16.gmra.mxu0 %v99
    %v166 = vpop.f32.mrf.mxu0
    %v167 = vadd.f32 0.0, %v166
    %v168 = vpop.f32.mrf.mxu0
    %v169 = vpop.f32.mrf.mxu0
    %v170 = vadd.f32 0.0, %v169
    %v171 = vpop.f32.mrf.mxu0
    %172 = vmatprep.mubr.bf16.mxu0 0
    %173 = vmatmul.mubr.bf16.gmra.mxu0 %v102
    %v174 = vpop.f32.mrf.mxu0
    %v175 = vadd.f32 0.0, %v174
    %v176 = vpop.f32.mrf.mxu0
    %v177 = vpop.f32.mrf.mxu0
    %v178 = vadd.f32 0.0, %v177
    %v179 = vpop.f32.mrf.mxu0
    %180 = vmatprep.mubr.bf16.mxu0 0
    %181 = vmatmul.mubr.bf16.gmra.mxu0 %v105
    %v182 = vpop.f32.mrf.mxu0
    %v183 = vadd.f32 0.0, %v182
    %v184 = vpop.f32.mrf.mxu0
    %v185 = vpop.f32.mrf.mxu0
    %v186 = vadd.f32 0.0, %v185
    %v187 = vpop.f32.mrf.mxu0
    %188 = vmatprep.mubr.bf16.mxu0 0
    %189 = vmatmul.mubr.bf16.gmra.mxu0 %v108
    %v190 = vpop.f32.mrf.mxu0
    %v191 = vadd.f32 0.0, %v190
    %v192 = vpop.f32.mrf.mxu0
    %v193 = vpop.f32.mrf.mxu0
    %v194 = vadd.f32 0.0, %v193
    %v195 = vpop.f32.mrf.mxu0
    %196 = vmatprep.mubr.bf16.mxu0 0
    %197 = vmatmul.mubr.bf16.gmra.mxu0 %v111
    %v198 = vpop.f32.mrf.mxu0
    %v199 = vadd.f32 0.0, %v198
    %v200 = vpop.f32.mrf.mxu0
    %v201 = vpop.f32.mrf.mxu0
    %v202 = vadd.f32 0.0, %v201
    %v203 = vpop.f32.mrf.mxu0
    %204 = vmatprep.mubr.bf16.mxu0 0
    %205 = vmatmul.mubr.bf16.gmra.mxu0 %v114
    %v206 = vpop.f32.mrf.mxu0
    %v207 = vadd.f32 0.0, %v206
    %v208 = vpop.f32.mrf.mxu0
    %v209 = vpop.f32.mrf.mxu0
    %v210 = vadd.f32 0.0, %v209
    %v211 = vpop.f32.mrf.mxu0
    %212 = vdwg.mxu0
    %v213 = vpack.c.bf16 %v154, %v151
    %v214 = vpack.c.bf16 %v162, %v159
    %v215 = vpack.c.bf16 %v170, %v167
    %v216 = vpack.c.bf16 %v178, %v175
    %v217 = vpack.c.bf16 %v186, %v183
    %v218 = vpack.c.bf16 %v194, %v191
    %v219 = vpack.c.bf16 %v202, %v199
    %v220 = vpack.c.bf16 %v210, %v207
    %v221 = vld [vmem:[%s2] sm:$0xf]
    %v222 = vld [vmem:[%s2 + $0x4] sm:$0xf]
    %v223 = vld [vmem:[%s2 + $0x8] sm:$0xf]
    %v224 = vld [vmem:[%s2 + $0xc] sm:$0xf]
    %v225 = vld [vmem:[%s2 + $0x10] sm:$0xf]
    %v226 = vld [vmem:[%s2 + $0x14] sm:$0xf]
    %v227 = vld [vmem:[%s2 + $0x18] sm:$0xf]
    %v228 = vld [vmem:[%s2 + $0x1c] sm:$0xf]
    %v229 = vld [vmem:[%s2 + $0x20] sm:$0xf]
    %v230 = vld [vmem:[%s2 + $0x24] sm:$0xf]
    %v231 = vld [vmem:[%s2 + $0x28] sm:$0xf]
    %v232 = vld [vmem:[%s2 + $0x2c] sm:$0xf]
    %v233 = vld [vmem:[%s2 + $0x30] sm:$0xf]
    %v234 = vld [vmem:[%s2 + $0x34] sm:$0xf]
    %v235 = vld [vmem:[%s2 + $0x38] sm:$0xf]
    %v236 = vld [vmem:[%s2 + $0x3c] sm:$0xf]
    %238 = vset.pattern.permute.xlu0 0
    %239 = vperm.xlu0 %238, %v221
    %v240 = vpop.permute.xlu0 %239
    %v243 = vunpack.c.l.s4 839922192
    %v244 = vunpack.c.0.s8 %v243
    %v245 = vlaneseq
    %v246 = vshrl.u32 %v245, 7
    %v247 = vsub.s32 %v244, %v246
    %v248 = vrot.slane %v240, %v247
    %250 = vset.pattern.permute.xlu0 0
    %251 = vperm.xlu0 %250, %v222
    %v252 = vpop.permute.xlu0 %251
    %v255 = vunpack.c.l.s4 839922192
    %v256 = vunpack.c.0.s8 %v255
    %v257 = vlaneseq
    %v258 = vshrl.u32 %v257, 7
    %v259 = vsub.s32 %v256, %v258
    %v260 = vrot.slane %v252, %v259
    %262 = vset.pattern.permute.xlu0 0
    %263 = vperm.xlu0 %262, %v223
    %v264 = vpop.permute.xlu0 %263
    %v267 = vunpack.c.l.s4 839922192
    %v268 = vunpack.c.0.s8 %v267
    %v269 = vlaneseq
    %v270 = vshrl.u32 %v269, 7
    %v271 = vsub.s32 %v268, %v270
    %v272 = vrot.slane %v264, %v271
    %274 = vset.pattern.permute.xlu0 0
    %275 = vperm.xlu0 %274, %v224
    %v276 = vpop.permute.xlu0 %275
    %v279 = vunpack.c.l.s4 839922192
    %v280 = vunpack.c.0.s8 %v279
    %v281 = vlaneseq
    %v282 = vshrl.u32 %v281, 7
    %v283 = vsub.s32 %v280, %v282
    %v284 = vrot.slane %v276, %v283
    %286 = vset.pattern.permute.xlu0 0
    %287 = vperm.xlu0 %286, %v225
    %v288 = vpop.permute.xlu0 %287
    %v291 = vunpack.c.l.s4 839922192
    %v292 = vunpack.c.0.s8 %v291
    %v293 = vlaneseq
    %v294 = vshrl.u32 %v293, 7
    %v295 = vsub.s32 %v292, %v294
    %v296 = vrot.slane %v288, %v295
    %298 = vset.pattern.permute.xlu0 0
    %299 = vperm.xlu0 %298, %v226
    %v300 = vpop.permute.xlu0 %299
    %v303 = vunpack.c.l.s4 839922192
    %v304 = vunpack.c.0.s8 %v303
    %v305 = vlaneseq
    %v306 = vshrl.u32 %v305, 7
    %v307 = vsub.s32 %v304, %v306
    %v308 = vrot.slane %v300, %v307
    %310 = vset.pattern.permute.xlu0 0
    %311 = vperm.xlu0 %310, %v227
    %v312 = vpop.permute.xlu0 %311
    %v315 = vunpack.c.l.s4 839922192
    %v316 = vunpack.c.0.s8 %v315
    %v317 = vlaneseq
    %v318 = vshrl.u32 %v317, 7
    %v319 = vsub.s32 %v316, %v318
    %v320 = vrot.slane %v312, %v319
    %322 = vset.pattern.permute.xlu0 0
    %323 = vperm.xlu0 %322, %v228
    %v324 = vpop.permute.xlu0 %323
    %v327 = vunpack.c.l.s4 839922192
    %v328 = vunpack.c.0.s8 %v327
    %v329 = vlaneseq
    %v330 = vshrl.u32 %v329, 7
    %v331 = vsub.s32 %v328, %v330
    %v332 = vrot.slane %v324, %v331
    %334 = vset.pattern.permute.xlu0 0
    %335 = vperm.xlu0 %334, %v229
    %v336 = vpop.permute.xlu0 %335
    %v339 = vunpack.c.l.s4 839922192
    %v340 = vunpack.c.0.s8 %v339
    %v341 = vlaneseq
    %v342 = vshrl.u32 %v341, 7
    %v343 = vsub.s32 %v340, %v342
    %v344 = vrot.slane %v336, %v343
    %346 = vset.pattern.permute.xlu0 0
    %347 = vperm.xlu0 %346, %v230
    %v348 = vpop.permute.xlu0 %347
    %v351 = vunpack.c.l.s4 839922192
    %v352 = vunpack.c.0.s8 %v351
    %v353 = vlaneseq
    %v354 = vshrl.u32 %v353, 7
    %v355 = vsub.s32 %v352, %v354
    %v356 = vrot.slane %v348, %v355
    %358 = vset.pattern.permute.xlu0 0
    %359 = vperm.xlu0 %358, %v231
    %v360 = vpop.permute.xlu0 %359
    %v363 = vunpack.c.l.s4 839922192
    %v364 = vunpack.c.0.s8 %v363
    %v365 = vlaneseq
    %v366 = vshrl.u32 %v365, 7
    %v367 = vsub.s32 %v364, %v366
    %v368 = vrot.slane %v360, %v367
    %370 = vset.pattern.permute.xlu0 0
    %371 = vperm.xlu0 %370, %v232
    %v372 = vpop.permute.xlu0 %371
    %v375 = vunpack.c.l.s4 839922192
    %v376 = vunpack.c.0.s8 %v375
    %v377 = vlaneseq
    %v378 = vshrl.u32 %v377, 7
    %v379 = vsub.s32 %v376, %v378
    %v380 = vrot.slane %v372, %v379
    %382 = vset.pattern.permute.xlu0 0
    %383 = vperm.xlu0 %382, %v233
    %v384 = vpop.permute.xlu0 %383
    %v387 = vunpack.c.l.s4 839922192
    %v388 = vunpack.c.0.s8 %v387
    %v389 = vlaneseq
    %v390 = vshrl.u32 %v389, 7
    %v391 = vsub.s32 %v388, %v390
    %v392 = vrot.slane %v384, %v391
    %394 = vset.pattern.permute.xlu0 0
    %395 = vperm.xlu0 %394, %v234
    %v396 = vpop.permute.xlu0 %395
    %v399 = vunpack.c.l.s4 839922192
    %v400 = vunpack.c.0.s8 %v399
    %v401 = vlaneseq
    %v402 = vshrl.u32 %v401, 7
    %v403 = vsub.s32 %v400, %v402
    %v404 = vrot.slane %v396, %v403
    %406 = vset.pattern.permute.xlu0 0
    %407 = vperm.xlu0 %406, %v235
    %v408 = vpop.permute.xlu0 %407
    %v411 = vunpack.c.l.s4 839922192
    %v412 = vunpack.c.0.s8 %v411
    %v413 = vlaneseq
    %v414 = vshrl.u32 %v413, 7
    %v415 = vsub.s32 %v412, %v414
    %v416 = vrot.slane %v408, %v415
    %418 = vset.pattern.permute.xlu0 0
    %419 = vperm.xlu0 %418, %v236
    %v420 = vpop.permute.xlu0 %419
    %v423 = vunpack.c.l.s4 839922192
    %v424 = vunpack.c.0.s8 %v423
    %v425 = vlaneseq
    %v426 = vshrl.u32 %v425, 7
    %v427 = vsub.s32 %v424, %v426
    %v428 = vrot.slane %v420, %v427
    %v445 = vunpack.c.l.b16 %v248
    %v446 = vunpack.c.l.b16 %v260
    %v447 = vunpack.c.l.b16 %v272
    %v448 = vunpack.c.l.b16 %v284
    %v449 = vunpack.c.l.b16 %v296
    %v450 = vunpack.c.l.b16 %v308
    %v451 = vunpack.c.l.b16 %v320
    %v452 = vunpack.c.l.b16 %v332
    %v453 = vunpack.c.l.b16 %v344
    %v454 = vunpack.c.l.b16 %v356
    %v455 = vunpack.c.l.b16 %v368
    %v456 = vunpack.c.l.b16 %v380
    %v457 = vunpack.c.l.b16 %v392
    %v458 = vunpack.c.l.b16 %v404
    %v459 = vunpack.c.l.b16 %v416
    %v460 = vunpack.c.l.b16 %v428
    %v461 = vpack.c.b16 %v446, %v445
    %v462 = vpack.c.b16 %v448, %v447
    %v463 = vpack.c.b16 %v450, %v449
    %v464 = vpack.c.b16 %v452, %v451
    %v465 = vpack.c.b16 %v454, %v453
    %v466 = vpack.c.b16 %v456, %v455
    %v467 = vpack.c.b16 %v458, %v457
    %v468 = vpack.c.b16 %v460, %v459
    %v477 = vadd.bf16 %v213, %v461
    %v478 = vadd.bf16 %v214, %v462
    %v479 = vadd.bf16 %v215, %v463
    %v480 = vadd.bf16 %v216, %v464
    %v481 = vadd.bf16 %v217, %v465
    %v482 = vadd.bf16 %v218, %v466
    %v483 = vadd.bf16 %v219, %v467
    %v484 = vadd.bf16 %v220, %v468
    %v485 = vtanh.bf16.pop %v477
    %v486 = vtanh.bf16.pop %v478
    %v487 = vtanh.bf16.pop %v479
    %v488 = vtanh.bf16.pop %v480
    %v489 = vtanh.bf16.pop %v481
    %v490 = vtanh.bf16.pop %v482
    %v491 = vtanh.bf16.pop %v483
    %v492 = vtanh.bf16.pop %v484
    %v493 = vld [vmem:[%s3] sm:$0xf]
    %v494 = vld [vmem:[%s3 + $0x4] sm:$0xf]
    %v495 = vld [vmem:[%s3 + $0x8] sm:$0xf]
    %v496 = vld [vmem:[%s3 + $0xc] sm:$0xf]
    %v497 = vld [vmem:[%s3 + $0x10] sm:$0xf]
    %v498 = vld [vmem:[%s3 + $0x14] sm:$0xf]
    %v499 = vld [vmem:[%s3 + $0x18] sm:$0xf]
    %v500 = vld [vmem:[%s3 + $0x1c] sm:$0xf]
    %v501 = vld [vmem:[%s3 + $0x20] sm:$0xf]
    %v502 = vld [vmem:[%s3 + $0x24] sm:$0xf]
    %v503 = vld [vmem:[%s3 + $0x28] sm:$0xf]
    %v504 = vld [vmem:[%s3 + $0x2c] sm:$0xf]
    %v505 = vld [vmem:[%s3 + $0x30] sm:$0xf]
    %v506 = vld [vmem:[%s3 + $0x34] sm:$0xf]
    %v507 = vld [vmem:[%s3 + $0x38] sm:$0xf]
    %v508 = vld [vmem:[%s3 + $0x3c] sm:$0xf]
    %v525 = vunpack.c.l.b16 %v493
    %v526 = vunpack.c.l.b16 %v494
    %v527 = vunpack.c.l.b16 %v495
    %v528 = vunpack.c.l.b16 %v496
    %v529 = vunpack.c.l.b16 %v497
    %v530 = vunpack.c.l.b16 %v498
    %v531 = vunpack.c.l.b16 %v499
    %v532 = vunpack.c.l.b16 %v500
    %v533 = vunpack.c.l.b16 %v501
    %v534 = vunpack.c.l.b16 %v502
    %v535 = vunpack.c.l.b16 %v503
    %v536 = vunpack.c.l.b16 %v504
    %v537 = vunpack.c.l.b16 %v505
    %v538 = vunpack.c.l.b16 %v506
    %v539 = vunpack.c.l.b16 %v507
    %v540 = vunpack.c.l.b16 %v508
    %v541 = vpack.c.b16 %v526, %v525
    %v542 = vpack.c.b16 %v528, %v527
    %v543 = vpack.c.b16 %v530, %v529
    %v544 = vpack.c.b16 %v532, %v531
    %v545 = vpack.c.b16 %v534, %v533
    %v546 = vpack.c.b16 %v536, %v535
    %v547 = vpack.c.b16 %v538, %v537
    %v548 = vpack.c.b16 %v540, %v539
    %557 = vmatprep.subr.bf16.mxu0 0
    %558 = vmatpush1.bf16.msra.mxu0 %v492
    %559 = vmatprep.subr.bf16.mxu0 0
    %560 = vmatpush1.bf16.msra.mxu0 %v491
    %561 = vmatprep.subr.bf16.mxu0 0
    %562 = vmatpush1.bf16.msra.mxu0 %v490
    %563 = vmatprep.subr.bf16.mxu0 0
    %564 = vmatpush1.bf16.msra.mxu0 %v489
    %565 = vmatprep.subr.bf16.mxu0 0
    %566 = vmatpush1.bf16.msra.mxu0 %v488
    %567 = vmatprep.subr.bf16.mxu0 0
    %568 = vmatpush1.bf16.msra.mxu0 %v487
    %569 = vmatprep.subr.bf16.mxu0 0
    %570 = vmatpush1.bf16.msra.mxu0 %v486
    %571 = vmatprep.subr.bf16.mxu0 0
    %572 = vmatpush1.bf16.msra.mxu0 %v485
    %573 = vmatprep.subr.bf16.mxu0 0
    %574 = vmatpush2.bf16.msra.mxu0 0
    %575 = vmatprep.subr.bf16.mxu0 0
    %576 = vmatpush2.bf16.msra.mxu0 0
    %577 = vmatprep.subr.bf16.mxu0 0
    %578 = vmatpush2.bf16.msra.mxu0 0
    %579 = vmatprep.subr.bf16.mxu0 0
    %580 = vmatpush2.bf16.msra.mxu0 0
    %581 = vmatprep.subr.bf16.mxu0 0
    %582 = vmatpush2.bf16.msra.mxu0 0
    %583 = vmatprep.subr.bf16.mxu0 0
    %584 = vmatpush2.bf16.msra.mxu0 0
    %585 = vmatprep.subr.bf16.mxu0 0
    %586 = vmatpush2.bf16.msra.mxu0 0
    %587 = vmatprep.subr.bf16.mxu0 0
    %588 = vmatpush2.bf16.msra.mxu0 0
    %589 = vmatprep.mubr.bf16.mxu0 0
    %590 = vmatmul.mubr.bf16.gmra.mxu0 %v541
    %v591 = vpop.f32.mrf.mxu0
    %v592 = vadd.f32 0.0, %v591
    %v593 = vpop.f32.mrf.mxu0
    %v594 = vpop.f32.mrf.mxu0
    %v595 = vadd.f32 0.0, %v594
    %v596 = vpop.f32.mrf.mxu0
    %597 = vmatprep.mubr.bf16.mxu0 0
    %598 = vmatmul.mubr.bf16.gmra.mxu0 %v542
    %v599 = vpop.f32.mrf.mxu0
    %v600 = vadd.f32 0.0, %v599
    %v601 = vpop.f32.mrf.mxu0
    %v602 = vpop.f32.mrf.mxu0
    %v603 = vadd.f32 0.0, %v602
    %v604 = vpop.f32.mrf.mxu0
    %605 = vmatprep.mubr.bf16.mxu0 0
    %606 = vmatmul.mubr.bf16.gmra.mxu0 %v543
    %v607 = vpop.f32.mrf.mxu0
    %v608 = vadd.f32 0.0, %v607
    %v609 = vpop.f32.mrf.mxu0
    %v610 = vpop.f32.mrf.mxu0
    %v611 = vadd.f32 0.0, %v610
    %v612 = vpop.f32.mrf.mxu0
    %613 = vmatprep.mubr.bf16.mxu0 0
    %614 = vmatmul.mubr.bf16.gmra.mxu0 %v544
    %v615 = vpop.f32.mrf.mxu0
    %v616 = vadd.f32 0.0, %v615
    %v617 = vpop.f32.mrf.mxu0
    %v618 = vpop.f32.mrf.mxu0
    %v619 = vadd.f32 0.0, %v618
    %v620 = vpop.f32.mrf.mxu0
    %621 = vmatprep.mubr.bf16.mxu0 0
    %622 = vmatmul.mubr.bf16.gmra.mxu0 %v545
    %v623 = vpop.f32.mrf.mxu0
    %v624 = vadd.f32 0.0, %v623
    %v625 = vpop.f32.mrf.mxu0
    %v626 = vpop.f32.mrf.mxu0
    %v627 = vadd.f32 0.0, %v626
    %v628 = vpop.f32.mrf.mxu0
    %629 = vmatprep.mubr.bf16.mxu0 0
    %630 = vmatmul.mubr.bf16.gmra.mxu0 %v546
    %v631 = vpop.f32.mrf.mxu0
    %v632 = vadd.f32 0.0, %v631
    %v633 = vpop.f32.mrf.mxu0
    %v634 = vpop.f32.mrf.mxu0
    %v635 = vadd.f32 0.0, %v634
    %v636 = vpop.f32.mrf.mxu0
    %637 = vmatprep.mubr.bf16.mxu0 0
    %638 = vmatmul.mubr.bf16.gmra.mxu0 %v547
    %v639 = vpop.f32.mrf.mxu0
    %v640 = vadd.f32 0.0, %v639
    %v641 = vpop.f32.mrf.mxu0
    %v642 = vpop.f32.mrf.mxu0
    %v643 = vadd.f32 0.0, %v642
    %v644 = vpop.f32.mrf.mxu0
    %645 = vmatprep.mubr.bf16.mxu0 0
    %646 = vmatmul.mubr.bf16.gmra.mxu0 %v548
    %v647 = vpop.f32.mrf.mxu0
    %v648 = vadd.f32 0.0, %v647
    %v649 = vpop.f32.mrf.mxu0
    %v650 = vpop.f32.mrf.mxu0
    %v651 = vadd.f32 0.0, %v650
    %v652 = vpop.f32.mrf.mxu0
    %653 = vdwg.mxu0
    %v654 = vpack.c.bf16 %v595, %v592
    %v655 = vpack.c.bf16 %v603, %v600
    %v656 = vpack.c.bf16 %v611, %v608
    %v657 = vpack.c.bf16 %v619, %v616
    %v658 = vpack.c.bf16 %v627, %v624
    %v659 = vpack.c.bf16 %v635, %v632
    %v660 = vpack.c.bf16 %v643, %v640
    %v661 = vpack.c.bf16 %v651, %v648
    %v662 = vld [vmem:[%s4] sm:$0xf]
    %v663 = vld [vmem:[%s4 + $0x4] sm:$0xf]
    %v664 = vld [vmem:[%s4 + $0x8] sm:$0xf]
    %v665 = vld [vmem:[%s4 + $0xc] sm:$0xf]
    %v666 = vld [vmem:[%s4 + $0x10] sm:$0xf]
    %v667 = vld [vmem:[%s4 + $0x14] sm:$0xf]
    %v668 = vld [vmem:[%s4 + $0x18] sm:$0xf]
    %v669 = vld [vmem:[%s4 + $0x1c] sm:$0xf]
    %v670 = vld [vmem:[%s4 + $0x20] sm:$0xf]
    %v671 = vld [vmem:[%s4 + $0x24] sm:$0xf]
    %v672 = vld [vmem:[%s4 + $0x28] sm:$0xf]
    %v673 = vld [vmem:[%s4 + $0x2c] sm:$0xf]
    %v674 = vld [vmem:[%s4 + $0x30] sm:$0xf]
    %v675 = vld [vmem:[%s4 + $0x34] sm:$0xf]
    %v676 = vld [vmem:[%s4 + $0x38] sm:$0xf]
    %v677 = vld [vmem:[%s4 + $0x3c] sm:$0xf]
    %679 = vset.pattern.permute.xlu0 0
    %680 = vperm.xlu0 %679, %v662
    %v681 = vpop.permute.xlu0 %680
    %v684 = vunpack.c.l.s4 839922192
    %v685 = vunpack.c.0.s8 %v684
    %v686 = vlaneseq
    %v687 = vshrl.u32 %v686, 7
    %v688 = vsub.s32 %v685, %v687
    %v689 = vrot.slane %v681, %v688
    %691 = vset.pattern.permute.xlu0 0
    %692 = vperm.xlu0 %691, %v663
    %v693 = vpop.permute.xlu0 %692
    %v696 = vunpack.c.l.s4 839922192
    %v697 = vunpack.c.0.s8 %v696
    %v698 = vlaneseq
    %v699 = vshrl.u32 %v698, 7
    %v700 = vsub.s32 %v697, %v699
    %v701 = vrot.slane %v693, %v700
    %703 = vset.pattern.permute.xlu0 0
    %704 = vperm.xlu0 %703, %v664
    %v705 = vpop.permute.xlu0 %704
    %v708 = vunpack.c.l.s4 839922192
    %v709 = vunpack.c.0.s8 %v708
    %v710 = vlaneseq
    %v711 = vshrl.u32 %v710, 7
    %v712 = vsub.s32 %v709, %v711
    %v713 = vrot.slane %v705, %v712
    %715 = vset.pattern.permute.xlu0 0
    %716 = vperm.xlu0 %715, %v665
    %v717 = vpop.permute.xlu0 %716
    %v720 = vunpack.c.l.s4 839922192
    %v721 = vunpack.c.0.s8 %v720
    %v722 = vlaneseq
    %v723 = vshrl.u32 %v722, 7
    %v724 = vsub.s32 %v721, %v723
    %v725 = vrot.slane %v717, %v724
    %727 = vset.pattern.permute.xlu0 0
    %728 = vperm.xlu0 %727, %v666
    %v729 = vpop.permute.xlu0 %728
    %v732 = vunpack.c.l.s4 839922192
    %v733 = vunpack.c.0.s8 %v732
    %v734 = vlaneseq
    %v735 = vshrl.u32 %v734, 7
    %v736 = vsub.s32 %v733, %v735
    %v737 = vrot.slane %v729, %v736
    %739 = vset.pattern.permute.xlu0 0
    %740 = vperm.xlu0 %739, %v667
    %v741 = vpop.permute.xlu0 %740
    %v744 = vunpack.c.l.s4 839922192
    %v745 = vunpack.c.0.s8 %v744
    %v746 = vlaneseq
    %v747 = vshrl.u32 %v746, 7
    %v748 = vsub.s32 %v745, %v747
    %v749 = vrot.slane %v741, %v748
    %751 = vset.pattern.permute.xlu0 0
    %752 = vperm.xlu0 %751, %v668
    %v753 = vpop.permute.xlu0 %752
    %v756 = vunpack.c.l.s4 839922192
    %v757 = vunpack.c.0.s8 %v756
    %v758 = vlaneseq
    %v759 = vshrl.u32 %v758, 7
    %v760 = vsub.s32 %v757, %v759
    %v761 = vrot.slane %v753, %v760
    %763 = vset.pattern.permute.xlu0 0
    %764 = vperm.xlu0 %763, %v669
    %v765 = vpop.permute.xlu0 %764
    %v768 = vunpack.c.l.s4 839922192
    %v769 = vunpack.c.0.s8 %v768
    %v770 = vlaneseq
    %v771 = vshrl.u32 %v770, 7
    %v772 = vsub.s32 %v769, %v771
    %v773 = vrot.slane %v765, %v772
    %775 = vset.pattern.permute.xlu0 0
    %776 = vperm.xlu0 %775, %v670
    %v777 = vpop.permute.xlu0 %776
    %v780 = vunpack.c.l.s4 839922192
    %v781 = vunpack.c.0.s8 %v780
    %v782 = vlaneseq
    %v783 = vshrl.u32 %v782, 7
    %v784 = vsub.s32 %v781, %v783
    %v785 = vrot.slane %v777, %v784
    %787 = vset.pattern.permute.xlu0 0
    %788 = vperm.xlu0 %787, %v671
    %v789 = vpop.permute.xlu0 %788
    %v792 = vunpack.c.l.s4 839922192
    %v793 = vunpack.c.0.s8 %v792
    %v794 = vlaneseq
    %v795 = vshrl.u32 %v794, 7
    %v796 = vsub.s32 %v793, %v795
    %v797 = vrot.slane %v789, %v796
    %799 = vset.pattern.permute.xlu0 0
    %800 = vperm.xlu0 %799, %v672
    %v801 = vpop.permute.xlu0 %800
    %v804 = vunpack.c.l.s4 839922192
    %v805 = vunpack.c.0.s8 %v804
    %v806 = vlaneseq
    %v807 = vshrl.u32 %v806, 7
    %v808 = vsub.s32 %v805, %v807
    %v809 = vrot.slane %v801, %v808
    %811 = vset.pattern.permute.xlu0 0
    %812 = vperm.xlu0 %811, %v673
    %v813 = vpop.permute.xlu0 %812
    %v816 = vunpack.c.l.s4 839922192
    %v817 = vunpack.c.0.s8 %v816
    %v818 = vlaneseq
    %v819 = vshrl.u32 %v818, 7
    %v820 = vsub.s32 %v817, %v819
    %v821 = vrot.slane %v813, %v820
    %823 = vset.pattern.permute.xlu0 0
    %824 = vperm.xlu0 %823, %v674
    %v825 = vpop.permute.xlu0 %824
    %v828 = vunpack.c.l.s4 839922192
    %v829 = vunpack.c.0.s8 %v828
    %v830 = vlaneseq
    %v831 = vshrl.u32 %v830, 7
    %v832 = vsub.s32 %v829, %v831
    %v833 = vrot.slane %v825, %v832
    %835 = vset.pattern.permute.xlu0 0
    %836 = vperm.xlu0 %835, %v675
    %v837 = vpop.permute.xlu0 %836
    %v840 = vunpack.c.l.s4 839922192
    %v841 = vunpack.c.0.s8 %v840
    %v842 = vlaneseq
    %v843 = vshrl.u32 %v842, 7
    %v844 = vsub.s32 %v841, %v843
    %v845 = vrot.slane %v837, %v844
    %847 = vset.pattern.permute.xlu0 0
    %848 = vperm.xlu0 %847, %v676
    %v849 = vpop.permute.xlu0 %848
    %v852 = vunpack.c.l.s4 839922192
    %v853 = vunpack.c.0.s8 %v852
    %v854 = vlaneseq
    %v855 = vshrl.u32 %v854, 7
    %v856 = vsub.s32 %v853, %v855
    %v857 = vrot.slane %v849, %v856
    %859 = vset.pattern.permute.xlu0 0
    %860 = vperm.xlu0 %859, %v677
    %v861 = vpop.permute.xlu0 %860
    %v864 = vunpack.c.l.s4 839922192
    %v865 = vunpack.c.0.s8 %v864
    %v866 = vlaneseq
    %v867 = vshrl.u32 %v866, 7
    %v868 = vsub.s32 %v865, %v867
    %v869 = vrot.slane %v861, %v868
    %v886 = vunpack.c.l.b16 %v689
    %v887 = vunpack.c.l.b16 %v701
    %v888 = vunpack.c.l.b16 %v713
    %v889 = vunpack.c.l.b16 %v725
    %v890 = vunpack.c.l.b16 %v737
    %v891 = vunpack.c.l.b16 %v749
    %v892 = vunpack.c.l.b16 %v761
    %v893 = vunpack.c.l.b16 %v773
    %v894 = vunpack.c.l.b16 %v785
    %v895 = vunpack.c.l.b16 %v797
    %v896 = vunpack.c.l.b16 %v809
    %v897 = vunpack.c.l.b16 %v821
    %v898 = vunpack.c.l.b16 %v833
    %v899 = vunpack.c.l.b16 %v845
    %v900 = vunpack.c.l.b16 %v857
    %v901 = vunpack.c.l.b16 %v869
    %v902 = vpack.c.b16 %v887, %v886
    %v903 = vpack.c.b16 %v889, %v888
    %v904 = vpack.c.b16 %v891, %v890
    %v905 = vpack.c.b16 %v893, %v892
    %v906 = vpack.c.b16 %v895, %v894
    %v907 = vpack.c.b16 %v897, %v896
    %v908 = vpack.c.b16 %v899, %v898
    %v909 = vpack.c.b16 %v901, %v900
    %v918 = vadd.bf16 %v654, %v902
    %v919 = vadd.bf16 %v655, %v903
    %v920 = vadd.bf16 %v656, %v904
    %v921 = vadd.bf16 %v657, %v905
    %v922 = vadd.bf16 %v658, %v906
    %v923 = vadd.bf16 %v659, %v907
    %v924 = vadd.bf16 %v660, %v908
    %v925 = vadd.bf16 %v661, %v909
    %v926 = vtanh.bf16.pop %v918
    %v927 = vtanh.bf16.pop %v919
    %v928 = vtanh.bf16.pop %v920
    %v929 = vtanh.bf16.pop %v921
    %v930 = vtanh.bf16.pop %v922
    %v931 = vtanh.bf16.pop %v923
    %v932 = vtanh.bf16.pop %v924
    %v933 = vtanh.bf16.pop %v925
    %v934 = vld [vmem:[%s5] sm:$0x1]
    %s935 = sld [smem:[#allocation2]]
    %v936 = vstv %s935
    %937 = vmatprep.subr.bf16.mxu0 0
    %938 = vmatpush1.bf16.msra.mxu0 %v933
    %939 = vmatprep.subr.bf16.mxu0 0
    %940 = vmatpush1.bf16.msra.mxu0 %v932
    %941 = vmatprep.subr.bf16.mxu0 0
    %942 = vmatpush1.bf16.msra.mxu0 %v931
    %943 = vmatprep.subr.bf16.mxu0 0
    %944 = vmatpush1.bf16.msra.mxu0 %v930
    %945 = vmatprep.subr.bf16.mxu0 0
    %946 = vmatpush1.bf16.msra.mxu0 %v929
    %947 = vmatprep.subr.bf16.mxu0 0
    %948 = vmatpush1.bf16.msra.mxu0 %v928
    %949 = vmatprep.subr.bf16.mxu0 0
    %950 = vmatpush1.bf16.msra.mxu0 %v927
    %951 = vmatprep.subr.bf16.mxu0 0
    %952 = vmatpush1.bf16.msra.mxu0 %v926
    %953 = vmatprep.subr.bf16.mxu0 0
    %954 = vmatpush2.bf16.msra.mxu0 0
    %955 = vmatprep.subr.bf16.mxu0 0
    %956 = vmatpush2.bf16.msra.mxu0 0
    %957 = vmatprep.subr.bf16.mxu0 0
    %958 = vmatpush2.bf16.msra.mxu0 0
    %959 = vmatprep.subr.bf16.mxu0 0
    %960 = vmatpush2.bf16.msra.mxu0 0
    %961 = vmatprep.subr.bf16.mxu0 0
    %962 = vmatpush2.bf16.msra.mxu0 0
    %963 = vmatprep.subr.bf16.mxu0 0
    %964 = vmatpush2.bf16.msra.mxu0 0
    %965 = vmatprep.subr.bf16.mxu0 0
    %966 = vmatpush2.bf16.msra.mxu0 0
    %967 = vmatprep.subr.bf16.mxu0 0
    %968 = vmatpush2.bf16.msra.mxu0 0
    %969 = vmatprep.mubr.bf16.mxu0 0
    %970 = vmatmul.mubr.bf16.gmra.mxu0 %v934
    %v971 = vpop.f32.mrf.mxu0
    %v972 = vadd.f32 %v936, %v971
    %v973 = vpop.f32.mrf.mxu0
    %v974 = vpop.f32.mrf.mxu0
    %v975 = vpop.f32.mrf.mxu0
    %976 = vdwg.mxu0
    %v977 = vmul.f32 %v972, 0.5
    %v978 = vtanh.pop %v977
    %v979 = vadd.f32 %v978, 1.0
    %v980 = vmul.f32 %v979, 0.5
    %981 = vst [vmem:[#allocation3] sm:$0x1] %v980
    // Predicated region
    $region30: #{tpu_custom_call.1} parent=1 // pred_check
      _
    $region31: #{tpu_custom_call.1} parent=1 // pred_check_branch
      %983 = sbr.rel (0) target = $region33
    $region32: #{tpu_custom_call.1} parent=1 // pred_region
      %s985 = ssub.s32 16, 16
      %986 = vsyncadd [#allocation4], %s985
      %s988 = sshll.u32 [#allocation3], 4
      %s989 = int_to_ptr.vmem [resolvable:$true] %s988
      %991 = dma.vmem_to_hbm [thread:$0]  %s989, 16, %s7, [#allocation4]
    $region33: #{tpu_custom_call.1} parent=1 // pred_fallthru
      _
    // Predicated region
    $region34: #{tpu_custom_call.1} parent=1 // pred_check
      _
    $region35: #{tpu_custom_call.1} parent=1 // pred_check_branch
      %993 = sbr.rel (0) target = $region37
    $region36: #{tpu_custom_call.1} parent=1 // pred_region
      %994 = dma.done [#allocation4], 16
    $region37: #{tpu_custom_call.1} parent=1 // pred_fallthru
      _
    %995 = vsyncpa [#allocation4], 1

</llo_original>
